<compile_context>
chip_gen: v6e
topology: v6e:2x2x1
jax: 0.10.0
libtpu: 0.0.40
codegen_flags: <defaults>
</compile_context>

<pallas_src>
import functools

import jax
import jax.numpy as jnp
from jax.experimental import pallas as pl
from jax.experimental.pallas import tpu as pltpu

_MIB = 1024 * 1024
_LANE_CHOICES = (8192, 4096, 2048, 1024, 512, 256, 128)


def _sqrelu_kernel(x_ref, o_ref):
    x = x_ref[...]
    r = jnp.maximum(x, jnp.zeros_like(x))
    o_ref[...] = r * r


def _sublane_unit(dtype) -> int:
    # Sub-32-bit dtypes pack along sublanes.
    itemsize = jnp.dtype(dtype).itemsize
    return {4: 8, 2: 16, 1: 32}.get(itemsize, 8)


@functools.lru_cache(maxsize=1)
def _chip_config():
    """Returns (block_bytes, core_parallel) for the local TPU generation.

    v7x : ~3.2 TB/s HBM, 64 MiB VMEM, 2 TCs -> bigger blocks + core-parallel.
    v6e : ~1.4 TB/s HBM, 128 MiB VMEM, 1 TC -> 4 MiB blocks.
    v5e / unknown: ~0.8 TB/s -> 2 MiB blocks (already <10% step overhead).
    """
    kind = ""
    try:
        kind = jax.devices()[0].device_kind.lower()
    except Exception:
        pass
    if "v7" in kind or "tpu7" in kind or "tpu 7" in kind:
        return 6 * _MIB, True
    if "v6" in kind:
        return 4 * _MIB, False
    return 2 * _MIB, False


def _pick_lanes(n: int) -> int:
    for w in _LANE_CHOICES:
        if n % w == 0:
            return w
    raise AssertionError("caller must pass a 128-divisible n")


def _sqrelu_2d(x2d, rows, lanes, dtype, block_bytes, core_parallel, donate):
    """Run the kernel on a (rows, lanes) lane-dense slab."""
    itemsize = jnp.dtype(dtype).itemsize
    sub = _sublane_unit(dtype)

    # Row-tile sized to ~block_bytes, rounded to the dtype-aware sublane unit.
    rows_per_block = max(sub, block_bytes // (lanes * itemsize))
    rows_per_block = (rows_per_block // sub) * sub
    tr = rows if rows_per_block >= rows else rows_per_block

    grid = (pl.cdiv(rows, tr),)
    block_actual = tr * lanes * itemsize
    # 2 pipeline buffers x (input + output) x block, plus headroom.  Clamp so
    # we never exceed any generation's scoped/physical budget.
    vmem_limit = int(min(48 * _MIB, max(8 * _MIB, 4 * block_actual + 4 * _MIB)))

    def build(semantics):
        return pl.pallas_call(
            _sqrelu_kernel,
            out_shape=jax.ShapeDtypeStruct((rows, lanes), dtype),
            grid_spec=pltpu.PrefetchScalarGridSpec(
                num_scalar_prefetch=0,
                grid=grid,
                in_specs=[pl.BlockSpec((tr, lanes), lambda i: (i, 0))],
                out_specs=pl.BlockSpec((tr, lanes), lambda i: (i, 0)),
            ),
            compiler_params=pltpu.CompilerParams(
                dimension_semantics=semantics,
                vmem_limit_bytes=vmem_limit,
            ),
            cost_estimate=pl.CostEstimate(
                flops=2 * rows * lanes,
                transcendentals=0,
                bytes_accessed=2 * rows * lanes * itemsize,
            ),
            input_output_aliases={0: 0} if donate else {},
        )

    if core_parallel:
        sem = (getattr(pltpu, "CORE_PARALLEL", "parallel"),)
        try:
            return build(sem)(x2d)
        except Exception:
            # Fall back if CORE_PARALLEL is rejected on this chip/jax version.
            return build(("parallel",))(x2d)
    return build(("parallel",))(x2d)


def sqrelu(x, *, block_bytes=None, donate=False):
    """Elementwise relu(x)**2 via Pallas. Any shape / dtype supporting max+mul.

    `block_bytes=None` -> generation-aware default.
    `donate=True` -> alias the output onto the input buffer (only when the
    caller knows x is dead after this call).
    """
    orig_shape = x.shape
    dtype = x.dtype
    n = x.size
    if n == 0:
        return x

    cfg_block, core_parallel = _chip_config()
    if block_bytes is None:
        block_bytes = cfg_block

    flat = jnp.ravel(x)
    n_bulk = (n // 128) * 128
    tail = n - n_bulk

    if tail == 0:
        # Clean path: no wrapper copies at all.
        lanes = _pick_lanes(n)
        rows = n // lanes
        out = _sqrelu_2d(
            flat.reshape(rows, lanes), rows, lanes, dtype,
            block_bytes, core_parallel, donate,
        )
        return out.reshape(orig_shape)

    # Awkward size: stream the 128-divisible bulk through the kernel, finish
    # the (<128-element) tail with plain jnp.  No pad-concat / slice-back.
    pieces = []
    if n_bulk:
        lanes = _pick_lanes(n_bulk)
        rows = n_bulk // lanes
        bulk_out = _sqrelu_2d(
            flat[:n_bulk].reshape(rows, lanes), rows, lanes, dtype,
            block_bytes, core_parallel, False,
        )
        pieces.append(bulk_out.reshape(-1))
    tail_x = flat[n_bulk:]
    tail_r = jnp.maximum(tail_x, jnp.zeros_like(tail_x))
    pieces.append(tail_r * tail_r)
    return jnp.concatenate(pieces).reshape(orig_shape)


# ---- differentiable wrappers matching the PyTorch module's two modes -------

@jax.custom_vjp
def sqrelu_eval(x):
    """Eval-mode: forward relu(x)**2, true gradient 2*relu(x)."""
    return sqrelu(x)


def _eval_fwd(x):
    return sqrelu(x), x


def _eval_bwd(x, g):
    return (g * 2.0 * jnp.maximum(x, jnp.zeros_like(x)).astype(g.dtype),)


sqrelu_eval.defvjp(_eval_fwd, _eval_bwd)


@jax.custom_vjp
def sqrelu_train(x):
    """Train-mode: same forward value; surrogate gradient 2*(x>0)
    (matches the PyTorch detach trick, d/dx of 2*relu(x)-1)."""
    return sqrelu(x)


def _train_fwd(x):
    return sqrelu(x), x


def _train_bwd(x, g):
    return (g * 2.0 * (x > 0).astype(g.dtype),)


sqrelu_train.defvjp(_train_fwd, _train_bwd)


if __name__ == "__main__":
    key = jax.random.PRNGKey(0)

    # NCHW input, consistent with typical conv-layer usage of this activation.
    x = jax.random.normal(key, (2, 4, 16, 16), dtype=jnp.float32)
    y = sqrelu(x)
    jax.block_until_ready(y)
    ref = jnp.maximum(x, 0.0) ** 2
    assert y.shape == x.shape and y.dtype == x.dtype
    assert jnp.max(jnp.abs(y - ref)) < 1e-6

    # Awkward (non-128-divisible) size exercises the bulk + jnp-tail path.
    x2 = jax.random.normal(jax.random.PRNGKey(1), (3, 5, 7, 11), dtype=jnp.float32)
    y2 = sqrelu(x2)
    jax.block_until_ready(y2)
    ref2 = jnp.maximum(x2, 0.0) ** 2
    assert y2.shape == x2.shape and jnp.max(jnp.abs(y2 - ref2)) < 1e-6

    # bf16 path (dtype-aware sublane unit).
    x3 = jax.random.normal(jax.random.PRNGKey(2), (2, 4, 16, 16)).astype(jnp.bfloat16)
    y3 = sqrelu(x3)
    jax.block_until_ready(y3)
    ref3 = jnp.maximum(x3, jnp.zeros_like(x3)) ** 2
    assert y3.dtype == x3.dtype
    assert jnp.max(jnp.abs(y3.astype(jnp.float32) - ref3.astype(jnp.float32))) < 1e-2

    # Train-mode wrapper: identical forward value, surrogate gradient.
    yt = sqrelu_train(x)
    jax.block_until_ready(yt)
    assert jnp.max(jnp.abs(yt - ref)) < 1e-6

    print("KERNEL_OK")
</pallas_src>

<mosaic_0001>
module attributes {stable_mosaic.version = 11 : i64} {
  func.func @_sqrelu_kernel(%arg0: i32, %arg1: memref<1x2048xf32, #tpu.memory_space<vmem>>, %arg2: memref<1x2048xf32, #tpu.memory_space<vmem>>) attributes {dimension_semantics = [#tpu.dimension_semantics<parallel>], iteration_bounds = array<i64: 1>, scalar_prefetch = 0 : i64, scratch_operands = 0 : i64, tpu.core_type = #tpu.core_type<tc>, window_params = [{transform_indices = @transform_0, window_bounds = array<i64: 1, 2048>}, {transform_indices = @transform_1, window_bounds = array<i64: 1, 2048>}]} {
    %c0 = arith.constant 0 : index
    %c0_0 = arith.constant 0 : index
    %0 = vector.load %arg1[%c0, %c0_0] : memref<1x2048xf32, #tpu.memory_space<vmem>>, vector<1x2048xf32>
    %cst = arith.constant 0.000000e+00 : f32
    %1 = vector.broadcast %cst : f32 to vector<1x2048xf32>
    %2 = arith.maximumf %0, %1 : vector<1x2048xf32>
    %3 = arith.mulf %2, %2 : vector<1x2048xf32>
    %c0_1 = arith.constant 0 : index
    %c0_2 = arith.constant 0 : index
    %4 = vector.load %arg2[%c0_1, %c0_2] : memref<1x2048xf32, #tpu.memory_space<vmem>>, vector<1x2048xf32>
    tpu.vector_store %arg2[%c0_1, %c0_2], %3 {strides = array<i32>} : memref<1x2048xf32, #tpu.memory_space<vmem>>, vector<1x2048xf32>,
    return
  }
  func.func @transform_0(%arg0: i32) -> (i32, i32) {
    %c0_i32 = arith.constant 0 : i32
    %c0_i32_0 = arith.constant 0 : i32
    return %arg0, %c0_i32 : i32, i32
  }
  func.func @transform_1(%arg0: i32) -> (i32, i32) {
    %c0_i32 = arith.constant 0 : i32
    %c0_i32_0 = arith.constant 0 : i32
    return %arg0, %c0_i32 : i32, i32
  }
}

</mosaic_0001>

<llo_original>
// kernel: tpu_custom_call.1
$region0: #{tpu_custom_call.1}
  #allocation0 [shape = 'u32[]', space=smem, size = 0x4, offset = 0x4, fixed_abs, tag = 'smem constant byte address 0x4 - core index']
  #allocation1 [shape = 'u32[144,128]{1,0:T(1,128)}', space=vmem, size = 0x12000, scoped, tag = 'internal scratch']
  %s0 = inlined_call_operand.hbm [shape: f32[1,2048], index: 0, kind: input, shape index: {}]
  %s1 = inlined_call_operand.hbm [shape: f32[1,2048], index: 1, kind: output, shape index: {}]
  %s2 = sld [smem:[#allocation0]]
  $region18: #{tpu_custom_call.1} parent=0
    _
  %s4 = ssub.s32 1, %s2
  %s5 = scalar_select 0, %s4, %s2
  $region1: #{tpu_custom_call.1} parent=0
    #allocation2 [shape = 'u8[8192]{0}', space=vmem, size = 0x2000, scoped, tag = 'input window, operand 0, single buffered']
    #allocation3 [shape = 's32[1]{0}', space=sflag, size = 0x4, scoped, tag = 'scoped memory for tpu_custom_call.1']
    #allocation4 [shape = 's32[1]{0}', space=sflag, size = 0x4, scoped, tag = 'scoped memory for tpu_custom_call.1']
    #allocation5 [shape = 'u8[8192]{0}', space=vmem, size = 0x2000, scoped, tag = 'output window, operand 0, single buffered']
    %6 = vsyncpa [#allocation3], 0
    %7 = vsyncpa [#allocation4], 0
    // Predicated region
    $region2: #{tpu_custom_call.1} parent=1 // pred_check
      _
    $region3: #{tpu_custom_call.1} parent=1 // pred_check_branch
      %9 = sbr.rel (0) target = $region5
    $region4: #{tpu_custom_call.1} parent=1 // pred_region
      %s11 = ssub.s32 256, 256
      %12 = vsyncadd [#allocation3], %s11
      %s14 = sshll.u32 [#allocation2], 4
      %s15 = int_to_ptr.vmem [resolvable:$true] %s14
      %17 = dma.hbm_to_vmem [thread:$0]  %s0, 256, %s15, [#allocation3]
    $region5: #{tpu_custom_call.1} parent=1 // pred_fallthru
      _
    // Predicated region
    $region6: #{tpu_custom_call.1} parent=1 // pred_check
      _
    $region7: #{tpu_custom_call.1} parent=1 // pred_check_branch
      %19 = sbr.rel (0) target = $region9
    $region8: #{tpu_custom_call.1} parent=1 // pred_region
      %20 = dma.done [#allocation3], 256
    $region9: #{tpu_custom_call.1} parent=1 // pred_fallthru
      _
    %v21 = vld [vmem:[#allocation2] sm:$0xff]
    %v22 = vld [vmem:[#allocation2 + $0x8] sm:$0xff]
    %v23 = vmax.f32 %v21, 0.0
    %v24 = vmax.f32 %v22, 0.0
    %v25 = vmul.f32 %v23, %v23
    %v26 = vmul.f32 %v24, %v24
    %27 = vst [vmem:[#allocation5] sm:$0xff] %v25
    %28 = vst [vmem:[#allocation5 + $0x8] sm:$0xff] %v26
    // Predicated region
    $region10: #{tpu_custom_call.1} parent=1 // pred_check
      _
    $region11: #{tpu_custom_call.1} parent=1 // pred_check_branch
      %30 = sbr.rel (0) target = $region13
    $region12: #{tpu_custom_call.1} parent=1 // pred_region
      %s32 = ssub.s32 256, 256
      %33 = vsyncadd [#allocation4], %s32
      %s35 = sshll.u32 [#allocation5], 4
      %s36 = int_to_ptr.vmem [resolvable:$true] %s35
      %38 = dma.vmem_to_hbm [thread:$0]  %s36, 256, %s1, [#allocation4]
    $region13: #{tpu_custom_call.1} parent=1 // pred_fallthru
      _
    // Predicated region
    $region14: #{tpu_custom_call.1} parent=1 // pred_check
      _
    $region15: #{tpu_custom_call.1} parent=1 // pred_check_branch
      %40 = sbr.rel (0) target = $region17
    $region16: #{tpu_custom_call.1} parent=1 // pred_region
      %41 = dma.done [#allocation4], 256
    $region17: #{tpu_custom_call.1} parent=1 // pred_fallthru
      _
    %42 = vsyncpa [#allocation3], 1
    %43 = vsyncpa [#allocation4], 1

</llo_original>
